<compile_context>
chip_gen: v7x
topology: tpu7x:2x2x1
jax: 0.10.0
libtpu: 0.0.40
codegen_flags: <defaults>
</compile_context>

<pallas_src>
import jax
import jax.numpy as jnp
import numpy as np
from jax.experimental import pallas as pl
from jax.experimental.pallas import tpu as pltpu

_LANE_BLOCK_CAP = 2048  # criteria rows (lanes) per grid step


def _round_up(x, m):
    return ((x + m - 1) // m) * m


def _masked_ce_kernel(lg_ref, lab_ref, eff_ref, ce_sum_ref):
    """Masked cross-entropy partial sum for one (branch, lane-block) tile.

    lg_ref     : [1, C, L] logits (class axis C on sublanes, criteria on lanes)
    lab_ref    : [1, 1, L] int32 labels (0 in lane padding)
    eff_ref    : [1, 1, L] f32 effective mask (emb_mask * (label != 2); 0 in padding)
    ce_sum_ref : [1, 1, 1, 1] f32 partial sum of masked CE over this tile
    """
    C = lg_ref.shape[1]
    lg = lg_ref[0].astype(jnp.float32)          # [C, L]
    lab = lab_ref[0]                            # [1, L] int32
    eff = eff_ref[0]                            # [1, L] f32

    # log-softmax over the (tiny, sublane) class axis.
    mx = jnp.max(lg, axis=0, keepdims=True)                               # [1, L]
    lse = jnp.log(jnp.sum(jnp.exp(lg - mx), axis=0, keepdims=True)) + mx  # [1, L]

    # logits[label] via C unrolled selects (C is tiny and static).
    picked = jnp.zeros_like(lse)
    for c in range(C):
        picked = jnp.where(lab == c, lg[c:c + 1, :], picked)

    ce = (lse - picked) * eff                                             # [1, L]
    ce_sum_ref[0, 0] = jnp.sum(ce, axis=1, keepdims=True)                 # [1, 1]


@jax.jit
def deepenroll_loss(logit_inc, inc_label, inc_mask,
                    logit_exc, exc_label, exc_mask):
    P, T, S_inc, C = logit_inc.shape
    S_exc = logit_exc.shape[2]
    nb = min(P, T)

    # Lane-dense slab width shared by both branches (multiple of 128).
    n_max = max(nb * S_inc, nb * S_exc)
    l_blk = min(_round_up(n_max, 128), _LANE_BLOCK_CAP)
    n_pad = _round_up(n_max, l_blk)
    num_lane_blocks = n_pad // l_blk

    def prep(logit, label, emb_mask):
        """Diag gather + eff-mask + lane-dense [C, n_pad] layout (all tiny)."""
        S = logit.shape[2]
        idx = jnp.arange(nb)
        diag = logit[idx, idx]                                   # [nb, S, C]
        lg = jnp.transpose(diag, (2, 0, 1)).reshape(C, nb * S)   # [C, N]
        lab = label.astype(jnp.int32).reshape(1, nb * S)
        eff = (emb_mask.astype(jnp.float32) *
               (label.astype(jnp.int32) != 2).astype(jnp.float32)
               ).reshape(1, nb * S)
        pad = n_pad - nb * S
        lg = jnp.pad(lg, ((0, 0), (0, pad)))
        lab = jnp.pad(lab, ((0, 0), (0, pad)))
        eff = jnp.pad(eff, ((0, 0), (0, pad)))
        return lg, lab, eff

    lg_i, lab_i, eff_i = prep(logit_inc, inc_label, inc_mask)
    lg_e, lab_e, eff_e = prep(logit_exc, exc_label, exc_mask)

    lg = jnp.stack([lg_i, lg_e], axis=0)     # [2, C, n_pad]  (input dtype)
    lab = jnp.stack([lab_i, lab_e], axis=0)  # [2, 1, n_pad]  int32
    eff = jnp.stack([eff_i, eff_e], axis=0)  # [2, 1, n_pad]  f32

    ce_sums = pl.pallas_call(
        _masked_ce_kernel,
        grid=(2, num_lane_blocks),
        in_specs=[
            pl.BlockSpec((1, C, l_blk), lambda b, l: (b, 0, l)),
            pl.BlockSpec((1, 1, l_blk), lambda b, l: (b, 0, l)),
            pl.BlockSpec((1, 1, l_blk), lambda b, l: (b, 0, l)),
        ],
        out_specs=pl.BlockSpec((1, 1, 1, 1), lambda b, l: (b, l, 0, 0)),
        out_shape=jax.ShapeDtypeStruct((2, num_lane_blocks, 1, 1), jnp.float32),
        compiler_params=pltpu.CompilerParams(
            dimension_semantics=("parallel", "parallel")),
    )(lg, lab, eff)

    # Tiny final reductions / scalar math stay in the wrapper so the grid
    # axes remain fully parallel (no scalar accumulator pinning one core).
    ce_tot = jnp.sum(ce_sums, axis=(1, 2, 3))               # [2] (inc, exc)
    msk_tot = jnp.stack([jnp.sum(eff_i), jnp.sum(eff_e)])   # [2]
    branch_losses = ce_tot / msk_tot
    return {'loss_value': 0.5 * (branch_losses[0] + branch_losses[1])}


# ----------------------------- pure-JAX reference ---------------------------
def _ref_masked_ce(logit, label, mask_):
    nb = min(logit.shape[0], logit.shape[1])
    diag = jnp.stack([logit[i, i] for i in range(nb)], axis=0)        # [nb, S, C]
    logp = jax.nn.log_softmax(diag.astype(jnp.float32), axis=-1)
    ce = -jnp.take_along_axis(logp, label[..., None].astype(jnp.int32), axis=-1)[..., 0]
    unk = jnp.where(label == 2, 0.0, 1.0).astype(jnp.float32)
    m = mask_.astype(jnp.float32) * unk
    return jnp.sum(ce * m) / jnp.sum(m)


def _ref_loss(logit_inc, inc_label, inc_mask, logit_exc, exc_label, exc_mask):
    return (_ref_masked_ce(logit_inc, inc_label, inc_mask) +
            _ref_masked_ce(logit_exc, exc_label, exc_mask)) / 2.0


if __name__ == "__main__":
    key = jax.random.PRNGKey(0)
    k1, k2, k3, k4, k5, k6 = jax.random.split(key, 6)

    P, T = 2, 3           # num_sample = min(P, T) = 2
    S_INC, S_EXC = 8, 16  # number of inclusion / exclusion criteria
    C = 3                 # classes: 0 = match, 1 = mismatch, 2 = unknown

    # Synthetic model outputs (stand-in for self.model(inputs)).
    logit_inc = jax.random.normal(k1, (P, T, S_INC, C), dtype=jnp.float32)
    logit_exc = jax.random.normal(k2, (P, T, S_EXC, C), dtype=jnp.float32)

    nb = min(P, T)
    inc_label = jax.random.randint(k3, (nb, S_INC), 0, 3).astype(jnp.int32)
    exc_label = jax.random.randint(k4, (nb, S_EXC), 0, 3).astype(jnp.int32)
    inc_mask = (jax.random.uniform(k5, (nb, S_INC)) < 0.8).astype(jnp.float32)
    exc_mask = (jax.random.uniform(k6, (nb, S_EXC)) < 0.8).astype(jnp.float32)

    # Guarantee a non-empty effective mask (avoid 0/0) deterministically.
    inc_label = inc_label.at[:, 0].set(0)
    exc_label = exc_label.at[:, 0].set(1)
    inc_mask = inc_mask.at[:, 0].set(1.0)
    exc_mask = exc_mask.at[:, 0].set(1.0)

    result = deepenroll_loss(logit_inc, inc_label, inc_mask,
                             logit_exc, exc_label, exc_mask)
    loss_value = jax.block_until_ready(result['loss_value'])

    ref = jax.block_until_ready(
        _ref_loss(logit_inc, inc_label, inc_mask, logit_exc, exc_label, exc_mask))

    assert np.isfinite(float(loss_value)), "loss is not finite"
    assert np.allclose(float(loss_value), float(ref), rtol=1e-5, atol=1e-5), \
        f"mismatch: pallas={float(loss_value)} ref={float(ref)}"

    print("KERNEL_OK")
</pallas_src>

<mosaic_0001>
module attributes {stable_mosaic.version = 11 : i64} {
  func.func @_masked_ce_kernel(%arg0: i32, %arg1: i32, %arg2: memref<1x3x128xf32, #tpu.memory_space<vmem>>, %arg3: memref<1x1x128xi32, #tpu.memory_space<vmem>>, %arg4: memref<1x1x128xf32, #tpu.memory_space<vmem>>, %arg5: memref<1x1x1x1xf32, #tpu.memory_space<vmem>>) attributes {dimension_semantics = [#tpu.dimension_semantics<parallel>, #tpu.dimension_semantics<parallel>], iteration_bounds = array<i64: 2, 1>, scalar_prefetch = 0 : i64, scratch_operands = 0 : i64, tpu.core_type = #tpu.core_type<tc>, window_params = [{transform_indices = @transform_0, window_bounds = array<i64: 1, 3, 128>}, {transform_indices = @transform_1, window_bounds = array<i64: 1, 1, 128>}, {transform_indices = @transform_2, window_bounds = array<i64: 1, 1, 128>}, {transform_indices = @transform_3, window_bounds = array<i64: 1, 1, 1, 1>}]} {
    %c0 = arith.constant 0 : index
    %c0_0 = arith.constant 0 : index
    %c0_1 = arith.constant 0 : index
    %0 = vector.load %arg2[%c0, %c0_0, %c0_1] : memref<1x3x128xf32, #tpu.memory_space<vmem>>, vector<1x3x128xf32>
    %1 = vector.shape_cast %0 : vector<1x3x128xf32> to vector<3x128xf32>
    %c0_2 = arith.constant 0 : index
    %c0_3 = arith.constant 0 : index
    %c0_4 = arith.constant 0 : index
    %2 = vector.load %arg3[%c0_2, %c0_3, %c0_4] : memref<1x1x128xi32, #tpu.memory_space<vmem>>, vector<1x1x128xi32>
    %3 = vector.shape_cast %2 : vector<1x1x128xi32> to vector<1x128xi32>
    %c0_5 = arith.constant 0 : index
    %c0_6 = arith.constant 0 : index
    %c0_7 = arith.constant 0 : index
    %4 = vector.load %arg4[%c0_5, %c0_6, %c0_7] : memref<1x1x128xf32, #tpu.memory_space<vmem>>, vector<1x1x128xf32>
    %5 = vector.shape_cast %4 : vector<1x1x128xf32> to vector<1x128xf32>
    %cst = arith.constant dense<0xFF800000> : vector<128xf32>
    %6 = vector.multi_reduction <maximumf>, %1, %cst [0] : vector<3x128xf32> to vector<128xf32>
    %7 = vector.shape_cast %6 : vector<128xf32> to vector<1x128xf32>
    %8 = vector.broadcast %7 : vector<1x128xf32> to vector<3x128xf32>
    %9 = arith.subf %1, %8 : vector<3x128xf32>
    %10 = math.exp %9 : vector<3x128xf32>
    %cst_8 = arith.constant dense<0.000000e+00> : vector<128xf32>
    %11 = vector.multi_reduction <add>, %10, %cst_8 [0] : vector<3x128xf32> to vector<128xf32>
    %12 = vector.shape_cast %11 : vector<128xf32> to vector<1x128xf32>
    %13 = math.log %12 : vector<1x128xf32>
    %14 = arith.addf %13, %7 : vector<1x128xf32>
    %cst_9 = arith.constant 0.000000e+00 : f32
    %15 = vector.broadcast %cst_9 : f32 to vector<1x128xf32>
    %c0_i32 = arith.constant 0 : i32
    %16 = vector.broadcast %c0_i32 : i32 to vector<1x128xi32>
    %17 = arith.cmpi eq, %3, %16 : vector<1x128xi32>
    %18 = vector.extract_strided_slice %1 {offsets = [0, 0], sizes = [1, 128], strides = [1, 1]} : vector<3x128xf32> to vector<1x128xf32>
    %19 = arith.select %17, %18, %15 : vector<1x128xi1>, vector<1x128xf32>
    %c1_i32 = arith.constant 1 : i32
    %20 = vector.broadcast %c1_i32 : i32 to vector<1x128xi32>
    %21 = arith.cmpi eq, %3, %20 : vector<1x128xi32>
    %22 = vector.extract_strided_slice %1 {offsets = [1, 0], sizes = [1, 128], strides = [1, 1]} : vector<3x128xf32> to vector<1x128xf32>
    %23 = arith.select %21, %22, %19 : vector<1x128xi1>, vector<1x128xf32>
    %c2_i32 = arith.constant 2 : i32
    %24 = vector.broadcast %c2_i32 : i32 to vector<1x128xi32>
    %25 = arith.cmpi eq, %3, %24 : vector<1x128xi32>
    %26 = vector.extract_strided_slice %1 {offsets = [2, 0], sizes = [1, 128], strides = [1, 1]} : vector<3x128xf32> to vector<1x128xf32>
    %27 = arith.select %25, %26, %23 : vector<1x128xi1>, vector<1x128xf32>
    %28 = arith.subf %14, %27 : vector<1x128xf32>
    %29 = arith.mulf %28, %5 : vector<1x128xf32>
    %cst_10 = arith.constant dense<0.000000e+00> : vector<1xf32>
    %30 = vector.multi_reduction <add>, %29, %cst_10 [1] : vector<1x128xf32> to vector<1xf32>
    %31 = vector.shape_cast %30 : vector<1xf32> to vector<1x1xf32>
    %c0_11 = arith.constant 0 : index
    %c0_12 = arith.constant 0 : index
    %c0_13 = arith.constant 0 : index
    %c0_14 = arith.constant 0 : index
    %32 = vector.load %arg5[%c0_11, %c0_12, %c0_13, %c0_14] : memref<1x1x1x1xf32, #tpu.memory_space<vmem>>, vector<1x1x1x1xf32>
    %33 = vector.shape_cast %32 : vector<1x1x1x1xf32> to vector<1x1xf32>
    %34 = vector.shape_cast %31 : vector<1x1xf32> to vector<1x1x1x1xf32>
    tpu.vector_store %arg5[%c0_11, %c0_12, %c0_13, %c0_14], %34 {strides = array<i32>} : memref<1x1x1x1xf32, #tpu.memory_space<vmem>>, vector<1x1x1x1xf32>,
    return
  }
  func.func @transform_0(%arg0: i32, %arg1: i32) -> (i32, i32, i32) {
    %c0_i32 = arith.constant 0 : i32
    %c0_i32_0 = arith.constant 0 : i32
    return %arg0, %c0_i32, %arg1 : i32, i32, i32
  }
  func.func @transform_1(%arg0: i32, %arg1: i32) -> (i32, i32, i32) {
    %c0_i32 = arith.constant 0 : i32
    %c0_i32_0 = arith.constant 0 : i32
    return %arg0, %c0_i32, %arg1 : i32, i32, i32
  }
  func.func @transform_2(%arg0: i32, %arg1: i32) -> (i32, i32, i32) {
    %c0_i32 = arith.constant 0 : i32
    %c0_i32_0 = arith.constant 0 : i32
    return %arg0, %c0_i32, %arg1 : i32, i32, i32
  }
  func.func @transform_3(%arg0: i32, %arg1: i32) -> (i32, i32, i32, i32) {
    %c0_i32 = arith.constant 0 : i32
    %c0_i32_0 = arith.constant 0 : i32
    %c0_i32_1 = arith.constant 0 : i32
    return %arg0, %arg1, %c0_i32, %c0_i32_0 : i32, i32, i32, i32
  }
}

</mosaic_0001>

<llo_original>
// kernel: deepenroll_loss.1
$region0: #{deepenroll_loss.1}
  #allocation0 [shape = 'u32[]', space=smem, size = 0x4, offset = 0x4, fixed_abs, tag = 'smem constant byte address 0x4 - core index']
  #allocation1 [shape = 'u32[144,128]{1,0:T(1,128)}', space=vmem, size = 0x12000, scoped, tag = 'internal scratch']
  %s0 = inlined_call_operand.vmem [shape: f32[2,3,128], index: 0, kind: input, shape index: {}]
  %s1 = inlined_call_operand.vmem [shape: s32[2,1,128], index: 1, kind: input, shape index: {}]
  %s2 = inlined_call_operand.vmem [shape: f32[2,1,128], index: 2, kind: input, shape index: {}]
  %s3 = inlined_call_operand.vmem [shape: f32[2,1,1,1], index: 3, kind: output, shape index: {}]
  %s4 = sld [smem:[#allocation0]]
  $region45: #{deepenroll_loss.1} parent=0
    _
  %s6 = ssub.s32 1, %s4
  %s7 = scalar_select 0, %s6, %s4
  loop: start=0, step=1, limit=4
  $region2: #{deepenroll_loss.1} parent=0 // loop_pre_header
    _
  $region3: #{deepenroll_loss.1} parent=0 // loop_header
    %s9 = sphi 0, %s13
    %p10 = scmp.ge.s32.totalorder %s9, 4
    %s16 = sphi 0, %s28
    %s17 = sphi 0, %s24
    %s18 = sphi 0, %s16
    %s19 = sphi 0, %s17
    %s20 = sphi 0, %s18
    %s21 = sphi 0, %s19
    %s33 = sphi 0, %s35
    %s36 = sphi 0, %s33
    %s37 = sphi 0, %s36
    %s53 = sphi 0, %s37
    %s61 = sphi 0, %s63
    %s64 = sphi 0, %s61
    %s65 = sphi 0, %s64
    %s81 = sphi 0, %s65
    %s89 = sphi 0, %s91
    %s92 = sphi 0, %s89
    %s93 = sphi 0, %s92
    %s109 = sphi 0, %s93
    %s117 = sphi 0, %s119
    %s120 = sphi 0, %s117
    %s121 = sphi 0, %s120
    %s137 = sphi 0, %s121
  $region4: #{deepenroll_loss.1} parent=0 // loop_header_branch
    %12 = sbr.rel (%p10) target = $region8
  $region5: #{deepenroll_loss.1} parent=0 // loop_body
    %s14 = ssub.s32 %s9, 1
    %s15 = ssub.s32 %s9, 2
    %s22 = sadd.s32 1, %s17
    %p23 = scmp.ge.s32.totalorder %s22, 1
    %s24 = scalar_select %p23, 0, %s22
    %s25 = sadd.s32 1, %s16
    %s26 = scalar_select %p23, %s25, %s16
    %p27 = scmp.ge.s32.totalorder %s26, 2
    %s28 = scalar_select %p27, 0, %s26
    %s29 = ssub.s32 %s16, %s28
    %s30 = ssub.s32 %s17, %s24
    %s31 = sor.u32 %s29, %s30
    %p32 = scmp.eq.s32.totalorder %s31, 0
    %s34 = sadd.s32 %s33, 1
    %s35 = scalar_select %p32, %s33, %s34
    %p38 = pneg %p32
    %p39 = scmp.eq.s32.totalorder %s9, 1
    %p40 = por %p38, %p39
    %p41 = scmp.ne.s32.totalorder %s33, %s36
    %p42 = scmp.eq.s32.totalorder %s9, 0
    %p43 = por %p41, %p42
    %p44 = scmp.ne.s32.totalorder %s33, %s36
    %p45 = scmp.eq.s32.totalorder %s14, 1
    %p46 = por %p44, %p45
    %p47 = scmp.ne.s32.totalorder %s36, %s37
    %p48 = scmp.eq.s32.totalorder %s14, 0
    %p49 = por %p47, %p48
    %p50 = scmp.ne.s32.totalorder %s36, %s37
    %p51 = scmp.eq.s32.totalorder %s15, 1
    %p52 = por %p50, %p51
    %p54 = scmp.ne.s32.totalorder %s37, %s53
    %p55 = scmp.eq.s32.totalorder %s15, 0
    %p56 = por %p54, %p55
    %s57 = ssub.s32 %s16, %s28
    %s58 = ssub.s32 %s17, %s24
    %s59 = sor.u32 %s57, %s58
    %p60 = scmp.eq.s32.totalorder %s59, 0
    %s62 = sadd.s32 %s61, 1
    %s63 = scalar_select %p60, %s61, %s62
    %p66 = pneg %p60
    %p67 = scmp.eq.s32.totalorder %s9, 1
    %p68 = por %p66, %p67
    %p69 = scmp.ne.s32.totalorder %s61, %s64
    %p70 = scmp.eq.s32.totalorder %s9, 0
    %p71 = por %p69, %p70
    %p72 = scmp.ne.s32.totalorder %s61, %s64
    %p73 = scmp.eq.s32.totalorder %s14, 1
    %p74 = por %p72, %p73
    %p75 = scmp.ne.s32.totalorder %s64, %s65
    %p76 = scmp.eq.s32.totalorder %s14, 0
    %p77 = por %p75, %p76
    %p78 = scmp.ne.s32.totalorder %s64, %s65
    %p79 = scmp.eq.s32.totalorder %s15, 1
    %p80 = por %p78, %p79
    %p82 = scmp.ne.s32.totalorder %s65, %s81
    %p83 = scmp.eq.s32.totalorder %s15, 0
    %p84 = por %p82, %p83
    %s85 = ssub.s32 %s16, %s28
    %s86 = ssub.s32 %s17, %s24
    %s87 = sor.u32 %s85, %s86
    %p88 = scmp.eq.s32.totalorder %s87, 0
    %s90 = sadd.s32 %s89, 1
    %s91 = scalar_select %p88, %s89, %s90
    %p94 = pneg %p88
    %p95 = scmp.eq.s32.totalorder %s9, 1
    %p96 = por %p94, %p95
    %p97 = scmp.ne.s32.totalorder %s89, %s92
    %p98 = scmp.eq.s32.totalorder %s9, 0
    %p99 = por %p97, %p98
    %p100 = scmp.ne.s32.totalorder %s89, %s92
    %p101 = scmp.eq.s32.totalorder %s14, 1
    %p102 = por %p100, %p101
    %p103 = scmp.ne.s32.totalorder %s92, %s93
    %p104 = scmp.eq.s32.totalorder %s14, 0
    %p105 = por %p103, %p104
    %p106 = scmp.ne.s32.totalorder %s92, %s93
    %p107 = scmp.eq.s32.totalorder %s15, 1
    %p108 = por %p106, %p107
    %p110 = scmp.ne.s32.totalorder %s93, %s109
    %p111 = scmp.eq.s32.totalorder %s15, 0
    %p112 = por %p110, %p111
    %s113 = ssub.s32 %s16, %s28
    %s114 = ssub.s32 %s17, %s24
    %s115 = sor.u32 %s113, %s114
    %p116 = scmp.eq.s32.totalorder %s115, 0
    %s118 = sadd.s32 %s117, 1
    %s119 = scalar_select %p116, %s117, %s118
    %p122 = pneg %p116
    %p123 = scmp.eq.s32.totalorder %s9, 1
    %p124 = por %p122, %p123
    %p125 = scmp.ne.s32.totalorder %s117, %s120
    %p126 = scmp.eq.s32.totalorder %s9, 0
    %p127 = por %p125, %p126
    %p128 = scmp.ne.s32.totalorder %s117, %s120
    %p129 = scmp.eq.s32.totalorder %s14, 1
    %p130 = por %p128, %p129
    %p131 = scmp.ne.s32.totalorder %s120, %s121
    %p132 = scmp.eq.s32.totalorder %s14, 0
    %p133 = por %p131, %p132
    %p134 = scmp.ne.s32.totalorder %s120, %s121
    %p135 = scmp.eq.s32.totalorder %s15, 1
    %p136 = por %p134, %p135
    %p138 = scmp.ne.s32.totalorder %s121, %s137
    %p139 = scmp.eq.s32.totalorder %s15, 0
    %p140 = por %p138, %p139
    %p141 = scmp.le.s32.totalorder 1, %s9
    %p142 = scmp.lt.s32.totalorder %s9, 3
    %p143 = pnand %p141, %p142
    %p144 = pneg %p143
    // Predicated region
    $region9: #{deepenroll_loss.1} parent=5 // pred_check
      _
    $region10: #{deepenroll_loss.1} parent=5 // pred_check_branch
      %146 = sbr.rel (%p143) target = $region12
    $region11: #{deepenroll_loss.1} parent=5 // pred_region
      %s147 = ssub.s32 %s9, 1
    $region12: #{deepenroll_loss.1} parent=5 // pred_fallthru
      _
    %p148 = scmp.lt.s32.totalorder %s9, 2
    // Predicated region
    $region13: #{deepenroll_loss.1} parent=5 // pred_check
      %p149 = pneg %p148
    $region14: #{deepenroll_loss.1} parent=5 // pred_check_branch
      %151 = sbr.rel (%p149) target = $region16
    $region15: #{deepenroll_loss.1} parent=5 // pred_region
      // Predicated region
      $region17: #{deepenroll_loss.1} parent=15 // pred_check
        %p152 = pneg %p43
      $region18: #{deepenroll_loss.1} parent=15 // pred_check_branch
        %154 = sbr.rel (%p152) target = $region20
      $region19: #{deepenroll_loss.1} parent=15 // pred_region
        %p155 = scmp.lt.s32.totalorder %s16, 1
        %s156 = scalar_select %p155, %s16, 1
        %p157 = scmp.lt.s32.totalorder %s17, 0
        %s158 = scalar_select %p157, %s17, 0
        %s159 = sadd.s32 %s158, %s156
        %s160 = smul.addr %s159, 4
        %s161 = scalar_lea.vmem %s0, %s160
      $region20: #{deepenroll_loss.1} parent=15 // pred_fallthru
        _
      // Predicated region
      $region21: #{deepenroll_loss.1} parent=15 // pred_check
        %p162 = pneg %p71
      $region22: #{deepenroll_loss.1} parent=15 // pred_check_branch
        %164 = sbr.rel (%p162) target = $region24
      $region23: #{deepenroll_loss.1} parent=15 // pred_region
        %p165 = scmp.lt.s32.totalorder %s16, 1
        %s166 = scalar_select %p165, %s16, 1
        %p167 = scmp.lt.s32.totalorder %s17, 0
        %s168 = scalar_select %p167, %s17, 0
        %s169 = sadd.s32 %s168, %s166
        %s170 = scalar_lea.vmem %s1, %s169
      $region24: #{deepenroll_loss.1} parent=15 // pred_fallthru
        _
      // Predicated region
      $region25: #{deepenroll_loss.1} parent=15 // pred_check
        %p171 = pneg %p99
      $region26: #{deepenroll_loss.1} parent=15 // pred_check_branch
        %173 = sbr.rel (%p171) target = $region28
      $region27: #{deepenroll_loss.1} parent=15 // pred_region
        %p174 = scmp.lt.s32.totalorder %s16, 1
        %s175 = scalar_select %p174, %s16, 1
        %p176 = scmp.lt.s32.totalorder %s17, 0
        %s177 = scalar_select %p176, %s17, 0
        %s178 = sadd.s32 %s177, %s175
        %s179 = scalar_lea.vmem %s2, %s178
      $region28: #{deepenroll_loss.1} parent=15 // pred_fallthru
        _
    $region16: #{deepenroll_loss.1} parent=5 // pred_fallthru
      _
    %p180 = scmp.le.s32.totalorder 1, %s9
    %p181 = scmp.lt.s32.totalorder %s9, 3
    %p182 = pnand %p180, %p181
    %p183 = pneg %p182
    // Predicated region
    $region29: #{deepenroll_loss.1} parent=5 // pred_check
      _
    $region30: #{deepenroll_loss.1} parent=5 // pred_check_branch
      %185 = sbr.rel (%p182) target = $region32
    $region31: #{deepenroll_loss.1} parent=5 // pred_region
      %s186 = ssub.s32 %s9, 1
      %p187 = scmp.lt.s32.totalorder %s18, 1
      %s188 = scalar_select %p187, %s18, 1
      %p189 = scmp.lt.s32.totalorder %s19, 0
      %s190 = scalar_select %p189, %s19, 0
      %s191 = sadd.s32 %s190, %s188
      %s192 = smul.addr %s191, 4
      %s193 = scalar_lea.vmem %s0, %s192
      %p194 = pneg %p49
      %p195 = pneg %p46
      %p196 = scmp.lt.s32.totalorder %s18, 1
      %s197 = scalar_select %p196, %s18, 1
      %p198 = scmp.lt.s32.totalorder %s19, 0
      %s199 = scalar_select %p198, %s19, 0
      %s200 = sadd.s32 %s199, %s197
      %s201 = scalar_lea.vmem %s1, %s200
      %p202 = pneg %p77
      %p203 = pneg %p74
      %p204 = scmp.lt.s32.totalorder %s18, 1
      %s205 = scalar_select %p204, %s18, 1
      %p206 = scmp.lt.s32.totalorder %s19, 0
      %s207 = scalar_select %p206, %s19, 0
      %s208 = sadd.s32 %s207, %s205
      %s209 = scalar_lea.vmem %s2, %s208
      %p210 = pneg %p105
      %p211 = pneg %p102
      %p212 = pneg %p133
      %p213 = pneg %p130
      %p214 = scmp.lt.s32.totalorder %s18, 1
      %s215 = scalar_select %p214, %s18, 1
      %p216 = scmp.lt.s32.totalorder %s19, 0
      %s217 = scalar_select %p216, %s19, 0
      %s218 = sadd.s32 %s217, %s215
      %s219 = scalar_lea.vmem %s3, %s218
      %p220 = scmp.lt.s32.totalorder %s18, 1
      %s221 = scalar_select %p220, %s18, 1
      %p222 = scmp.lt.s32.totalorder %s19, 0
      %s223 = scalar_select %p222, %s19, 0
      %s224 = sadd.s32 %s223, %s221
      %s225 = smul.addr %s224, 4
      %s226 = scalar_lea.vmem %s0, %s225
      %p227 = scmp.lt.s32.totalorder %s18, 1
      %s228 = scalar_select %p227, %s18, 1
      %p229 = scmp.lt.s32.totalorder %s19, 0
      %s230 = scalar_select %p229, %s19, 0
      %s231 = sadd.s32 %s230, %s228
      %s232 = scalar_lea.vmem %s1, %s231
      %p233 = scmp.lt.s32.totalorder %s18, 1
      %s234 = scalar_select %p233, %s18, 1
      %p235 = scmp.lt.s32.totalorder %s19, 0
      %s236 = scalar_select %p235, %s19, 0
      %s237 = sadd.s32 %s236, %s234
      %s238 = scalar_lea.vmem %s2, %s237
      %p239 = scmp.lt.s32.totalorder %s18, 1
      %s240 = scalar_select %p239, %s18, 1
      %p241 = scmp.lt.s32.totalorder %s19, 0
      %s242 = scalar_select %p241, %s19, 0
      %s243 = sadd.s32 %s242, %s240
      %s244 = scalar_lea.vmem %s3, %s243
      %v245 = vld [vmem:[%s226] sm:$0x7]
      %v246 = vld [vmem:[%s232] sm:$0x1]
      %v247 = vld [vmem:[%s238] sm:$0x1]
      %vm248 = vcmask 1042432
      %v249 = vsel %vm248, %v245, -inf
      %v250 = vrot.slane %v249, 4
      %v251 = vmax.f32 %v249, %v250
      %v252 = vrot.slane %v251, 2
      %v253 = vmax.f32 %v251, %v252
      %v254 = vrot.slane %v253, 1
      %v255 = vmax.f32 %v253, %v254
      %v256 = vsub.f32 %v245, %v255
      %v257 = vmul.f32 %v256, 1.442695
      %v258 = vpow.pop %v257
      %v259 = vsel %vm248, %v258, 0.0
      %v260 = vrot.slane %v259, 4
      %v261 = vadd.f32 %v259, %v260
      %v262 = vrot.slane %v261, 2
      %v263 = vadd.f32 %v261, %v262
      %v264 = vrot.slane %v263, 1
      %v265 = vadd.f32 %v263, %v264
      %v266 = vlog2.pop %v265
      %v267 = vmul.f32 %v266, 0.6931472
      %v268 = vadd.f32 %v267, %v255
      %vm269 = vcmp.eq.s32.totalorder %v246, 0
      %v270 = vsel %vm269, %v245, 0.0
      %vm271 = vcmp.eq.s32.totalorder %v246, 1
      %v274 = vunpack.c.l.s4 1966171168
      %v275 = vunpack.c.0.s8 %v274
      %v276 = vlaneseq
      %v277 = vshrl.u32 %v276, 7
      %v278 = vsub.s32 %v275, %v277
      %v279 = vrot.slane %v245, %v278
      %v280 = vcombine.high %v279, %v279
      %v282 = vunpack.c.l.s4 1966171168
      %v283 = vunpack.c.0.s8 %v282
      %v284 = vlaneseq
      %v285 = vshrl.u32 %v284, 7
      %v286 = vsub.s32 %v283, %v285
      %v287 = vrot.slane %v279, %v286
      %v289 = vunpack.c.l.s4 1966171168
      %v290 = vunpack.c.0.s8 %v289
      %v291 = vlaneseq
      %v292 = vshrl.u32 %v291, 7
      %v293 = vsub.s32 %v290, %v292
      %v294 = vrot.slane %v280, %v293
      %v296 = vsel %vm271, %v294, %v270
      %vm297 = vcmp.eq.s32.totalorder %v246, 2
      %v298 = vcombine.high %v287, %v287
      %v300 = vsel %vm297, %v298, %v296
      %v301 = vsub.f32 %v268, %v300
      %v302 = vmul.f32 %v301, %v247
      %vm303 = vcmask 1040384
      %v304 = vsel %vm303, %v302, 0.0
      %305 = vadd.xlane.f32.xlu0 %v304
      %v306 = vpop.xlane.xlu0 %305
      %vm307 = vcmask 0
      %308 = vst.msk [vmem:[%s244] sm:$0x1] %vm307, %v306
      %p309 = scmp.lt.s32.totalorder %s18, 1
      %s310 = scalar_select %p309, %s18, 1
      %p311 = scmp.lt.s32.totalorder %s19, 0
      %s312 = scalar_select %p311, %s19, 0
      %s313 = sadd.s32 %s312, %s310
      %s314 = scalar_lea.vmem %s3, %s313
      // Predicated region
      $region33: #{deepenroll_loss.1} parent=31 // pred_check
        %p315 = pneg %p130
      $region34: #{deepenroll_loss.1} parent=31 // pred_check_branch
        %317 = sbr.rel (%p315) target = $region36
      $region35: #{deepenroll_loss.1} parent=31 // pred_region
        _
      $region36: #{deepenroll_loss.1} parent=31 // pred_fallthru
        _
    $region32: #{deepenroll_loss.1} parent=5 // pred_fallthru
      _
    %p318 = scmp.le.s32.totalorder 2, %s9
    // Predicated region
    $region37: #{deepenroll_loss.1} parent=5 // pred_check
      %p319 = pneg %p318
    $region38: #{deepenroll_loss.1} parent=5 // pred_check_branch
      %321 = sbr.rel (%p319) target = $region40
    $region39: #{deepenroll_loss.1} parent=5 // pred_region
      %s322 = ssub.s32 %s9, 2
      // Predicated region
      $region41: #{deepenroll_loss.1} parent=39 // pred_check
        %p323 = pneg %p136
      $region42: #{deepenroll_loss.1} parent=39 // pred_check_branch
        %325 = sbr.rel (%p323) target = $region44
      $region43: #{deepenroll_loss.1} parent=39 // pred_region
        %p326 = scmp.lt.s32.totalorder %s20, 1
        %s327 = scalar_select %p326, %s20, 1
        %p328 = scmp.lt.s32.totalorder %s21, 0
        %s329 = scalar_select %p328, %s21, 0
        %s330 = sadd.s32 %s329, %s327
        %s331 = scalar_lea.vmem %s3, %s330
      $region44: #{deepenroll_loss.1} parent=39 // pred_fallthru
        _
    $region40: #{deepenroll_loss.1} parent=5 // pred_fallthru
      _
  $region6: #{deepenroll_loss.1} parent=0 // loop_footer
    %s13 = sadd.s32 1, %s9
  $region7: #{deepenroll_loss.1} parent=0 // loop_footer_branch
    %8 = sbr.rel target = $region3
  $region8: #{deepenroll_loss.1} parent=0 // loop_exit
    _

</llo_original>
